<compile_context>
chip_gen: v6e
topology: v6e:2x2x1
jax: 0.10.0
libtpu: 0.0.40
codegen_flags: <defaults>
</compile_context>

<pallas_src>
import jax
import jax.numpy as jnp
from jax.experimental import pallas as pl
from jax.experimental.pallas import tpu as pltpu


def actnorm_kernel(x_ref, ls_ref, b_ref, o_ref):
    # x_ref / o_ref: (row_tile, lane_tile); ls_ref / b_ref: (row_tile, 1).
    scale = jnp.exp(ls_ref[...].astype(jnp.float32))          # tiny, EUP slot
    shift = b_ref[...].astype(jnp.float32)
    x = x_ref[...].astype(jnp.float32)
    o_ref[...] = (x * scale + shift).astype(o_ref.dtype)


def _choose_tiles(rows, hw, itemsize, vmem_budget_bytes):
    """Pick (row_tile, lane_tile) for a 2-D (rows, hw) elementwise kernel.

    Keeps the per-step footprint (2 in + 2 out double buffers) within
    vmem_budget_bytes, keeps the lane tile a multiple of 128 (masked edge via
    cdiv grid), keeps the row tile a multiple of the sublane pack (or the full
    extent), and avoids a single-step grid on non-trivial sizes (v7x megacore).
    """
    pack = max(8, 32 // max(1, itemsize))        # 8 f32, 16 bf16, 32 int8
    x_tile_budget = max(1, vmem_budget_bytes // 4)  # 2 in + 2 out buffers

    # Lane tile: multiple of 128, >= 512 lanes when hw allows (burst efficiency).
    if hw < 128:
        lane_tile = hw                            # full extent (always legal)
    else:
        row_est = min(rows, 8 * pack)
        target = x_tile_budget // max(1, row_est * itemsize)
        lane_tile = min(hw, max(512, target))
        lane_tile = max(128, (lane_tile // 128) * 128)

    # Row tile: full extent, or the largest multiple of the pack in budget.
    max_rows = max(1, x_tile_budget // max(1, lane_tile * itemsize))
    if rows <= max_rows:
        row_tile = rows                           # full extent (always legal)
    else:
        row_tile = max(pack, (max_rows // pack) * pack)

    # Don't let the grid collapse to one step on non-trivial inputs (v7x: 2 TCs).
    total_bytes = rows * hw * itemsize
    if pl.cdiv(rows, row_tile) * pl.cdiv(hw, lane_tile) == 1 and total_bytes > (2 << 20):
        if lane_tile >= 1024:
            lane_tile = max(512, ((lane_tile // 2) // 128) * 128)
        elif rows >= 2 * pack:
            row_tile = max(pack, ((row_tile // 2) // pack) * pack)

    return row_tile, lane_tile


def actnorm_forward(x, log_scale, bias, *,
                    vmem_budget_bytes=24 * 1024 * 1024, donate_x=False):
    """ActNorm forward: out = x * exp(log_scale) + bias (per-channel).

    x: (B, C, H, W); log_scale, bias: any shape broadcastable to (1, C, 1, 1).
    """
    B, C, H, W = x.shape
    HW = H * W
    rows = B * C
    itemsize = x.dtype.itemsize

    # 2-D lane-dense view of x; per-row parameter columns (param-sized arrays).
    x2 = x.reshape(rows, HW)
    ls_col = jnp.broadcast_to(jnp.asarray(log_scale).reshape(1, C), (B, C)).reshape(rows, 1)
    b_col = jnp.broadcast_to(jnp.asarray(bias).reshape(1, C), (B, C)).reshape(rows, 1)

    row_tile, lane_tile = _choose_tiles(rows, HW, itemsize, vmem_budget_bytes)
    grid = (pl.cdiv(rows, row_tile), pl.cdiv(HW, lane_tile))

    cost = pl.CostEstimate(
        flops=2 * rows * HW,
        transcendentals=rows,
        bytes_accessed=2 * rows * HW * itemsize + 2 * rows * ls_col.dtype.itemsize,
    )

    out2 = pl.pallas_call(
        actnorm_kernel,
        out_shape=jax.ShapeDtypeStruct((rows, HW), x.dtype),
        grid_spec=pltpu.PrefetchScalarGridSpec(
            num_scalar_prefetch=0,
            grid=grid,
            in_specs=[
                pl.BlockSpec((row_tile, lane_tile), lambda i, j: (i, j)),  # x
                pl.BlockSpec((row_tile, 1), lambda i, j: (i, 0)),          # log_scale col
                pl.BlockSpec((row_tile, 1), lambda i, j: (i, 0)),          # bias col
            ],
            out_specs=pl.BlockSpec((row_tile, lane_tile), lambda i, j: (i, j)),
        ),
        compiler_params=pltpu.CompilerParams(
            dimension_semantics=("parallel", "parallel"),
            vmem_limit_bytes=max(32 * 1024 * 1024, vmem_budget_bytes + (8 << 20)),
        ),
        cost_estimate=cost,
        input_output_aliases=({0: 0} if donate_x else {}),
    )(x2, ls_col, b_col)

    return out2.reshape(B, C, H, W)


if __name__ == "__main__":
    # Small shapes consistent with the module.
    B, C, H, W = 2, 4, 16, 16

    key = jax.random.PRNGKey(0)
    kx, ks, kb = jax.random.split(key, 3)

    x = jax.random.normal(kx, (B, C, H, W), dtype=jnp.float32)
    # PyTorch initializes these to zeros (identity); use small random values so
    # the scale/shift math is actually exercised by the check.
    log_scale = 0.1 * jax.random.normal(ks, (1, C, 1, 1), dtype=jnp.float32)
    bias = 0.1 * jax.random.normal(kb, (1, C, 1, 1), dtype=jnp.float32)

    out = actnorm_forward(x, log_scale, bias)
    out = jax.block_until_ready(out)

    # Reference check (plain JAX, mirrors the PyTorch forward).
    ref = x * jnp.exp(log_scale) + bias
    assert out.shape == (B, C, H, W)
    assert jnp.allclose(out, ref, atol=1e-5, rtol=1e-5), "mismatch vs reference"

    print("KERNEL_OK")
</pallas_src>

<mosaic_0001>
module attributes {stable_mosaic.version = 11 : i64} {
  func.func @actnorm_kernel(%arg0: i32, %arg1: i32, %arg2: memref<8x256xf32, #tpu.memory_space<vmem>>, %arg3: memref<8x1xf32, #tpu.memory_space<vmem>>, %arg4: memref<8x1xf32, #tpu.memory_space<vmem>>, %arg5: memref<8x256xf32, #tpu.memory_space<vmem>>) attributes {dimension_semantics = [#tpu.dimension_semantics<parallel>, #tpu.dimension_semantics<parallel>], iteration_bounds = array<i64: 1, 1>, scalar_prefetch = 0 : i64, scratch_operands = 0 : i64, tpu.core_type = #tpu.core_type<tc>, window_params = [{transform_indices = @transform_0, window_bounds = array<i64: 8, 256>}, {transform_indices = @transform_1, window_bounds = array<i64: 8, 1>}, {transform_indices = @transform_2, window_bounds = array<i64: 8, 1>}, {transform_indices = @transform_3, window_bounds = array<i64: 8, 256>}]} {
    %c0 = arith.constant 0 : index
    %c0_0 = arith.constant 0 : index
    %0 = vector.load %arg3[%c0, %c0_0] : memref<8x1xf32, #tpu.memory_space<vmem>>, vector<8x1xf32>
    %1 = math.exp %0 : vector<8x1xf32>
    %c0_1 = arith.constant 0 : index
    %c0_2 = arith.constant 0 : index
    %2 = vector.load %arg4[%c0_1, %c0_2] : memref<8x1xf32, #tpu.memory_space<vmem>>, vector<8x1xf32>
    %c0_3 = arith.constant 0 : index
    %c0_4 = arith.constant 0 : index
    %3 = vector.load %arg2[%c0_3, %c0_4] : memref<8x256xf32, #tpu.memory_space<vmem>>, vector<8x256xf32>
    %4 = vector.broadcast %1 : vector<8x1xf32> to vector<8x256xf32>
    %5 = arith.mulf %3, %4 : vector<8x256xf32>
    %6 = vector.broadcast %2 : vector<8x1xf32> to vector<8x256xf32>
    %7 = arith.addf %5, %6 : vector<8x256xf32>
    %c0_5 = arith.constant 0 : index
    %c0_6 = arith.constant 0 : index
    %8 = vector.load %arg5[%c0_5, %c0_6] : memref<8x256xf32, #tpu.memory_space<vmem>>, vector<8x256xf32>
    tpu.vector_store %arg5[%c0_5, %c0_6], %7 {strides = array<i32>} : memref<8x256xf32, #tpu.memory_space<vmem>>, vector<8x256xf32>,
    return
  }
  func.func @transform_0(%arg0: i32, %arg1: i32) -> (i32, i32) {
    %c0_i32 = arith.constant 0 : i32
    return %arg0, %arg1 : i32, i32
  }
  func.func @transform_1(%arg0: i32, %arg1: i32) -> (i32, i32) {
    %c0_i32 = arith.constant 0 : i32
    %c0_i32_0 = arith.constant 0 : i32
    return %arg0, %c0_i32 : i32, i32
  }
  func.func @transform_2(%arg0: i32, %arg1: i32) -> (i32, i32) {
    %c0_i32 = arith.constant 0 : i32
    %c0_i32_0 = arith.constant 0 : i32
    return %arg0, %c0_i32 : i32, i32
  }
  func.func @transform_3(%arg0: i32, %arg1: i32) -> (i32, i32) {
    %c0_i32 = arith.constant 0 : i32
    return %arg0, %arg1 : i32, i32
  }
}

</mosaic_0001>

<llo_original>
// kernel: tpu_custom_call.1
$region0: #{tpu_custom_call.1}
  #allocation0 [shape = 'u32[]', space=smem, size = 0x4, offset = 0x4, fixed_abs, tag = 'smem constant byte address 0x4 - core index']
  #allocation1 [shape = 'u32[144,128]{1,0:T(1,128)}', space=vmem, size = 0x12000, scoped, tag = 'internal scratch']
  %s0 = inlined_call_operand.vmem [shape: f32[8,256], index: 0, kind: input, shape index: {}]
  %s1 = inlined_call_operand.vmem [shape: f32[8,1], index: 1, kind: input, shape index: {}]
  %s2 = inlined_call_operand.vmem [shape: f32[8,1], index: 2, kind: input, shape index: {}]
  %s3 = inlined_call_operand.hbm [shape: f32[8,256], index: 3, kind: output, shape index: {}]
  %s4 = sld [smem:[#allocation0]]
  $region22: #{tpu_custom_call.1} parent=0
    _
  %s6 = ssub.s32 1, %s4
  %s7 = scalar_select 0, %s6, %s4
  $region1: #{tpu_custom_call.1} parent=0
    #allocation2 [shape = 'u8[8192]{0}', space=vmem, size = 0x2000, scoped, tag = 'output window, operand 0, single buffered']
    #allocation3 [shape = 's32[1]{0}', space=sflag, size = 0x4, scoped, tag = 'scoped memory for tpu_custom_call.1']
    %8 = vsyncpa [#allocation3], 0
    // Predicated region
    $region2: #{tpu_custom_call.1} parent=1 // pred_check
      _
    $region3: #{tpu_custom_call.1} parent=1 // pred_check_branch
      %10 = sbr.rel (0) target = $region5
    $region4: #{tpu_custom_call.1} parent=1 // pred_region
      _
    $region5: #{tpu_custom_call.1} parent=1 // pred_fallthru
      _
    // Predicated region
    $region6: #{tpu_custom_call.1} parent=1 // pred_check
      _
    $region7: #{tpu_custom_call.1} parent=1 // pred_check_branch
      %12 = sbr.rel (0) target = $region9
    $region8: #{tpu_custom_call.1} parent=1 // pred_region
      _
    $region9: #{tpu_custom_call.1} parent=1 // pred_fallthru
      _
    // Predicated region
    $region10: #{tpu_custom_call.1} parent=1 // pred_check
      _
    $region11: #{tpu_custom_call.1} parent=1 // pred_check_branch
      %14 = sbr.rel (0) target = $region13
    $region12: #{tpu_custom_call.1} parent=1 // pred_region
      _
    $region13: #{tpu_custom_call.1} parent=1 // pred_fallthru
      _
    %v15 = vld [vmem:[%s1] sm:$0xff]
    %v16 = vmul.f32 %v15, 1.442695
    %v17 = vpow.pop %v16
    %v18 = vld [vmem:[%s2] sm:$0xff]
    %v19 = vld [vmem:[%s0] sm:$0xff]
    %v20 = vld [vmem:[%s0 + $0x8] sm:$0xff]
    %22 = vset.pattern.permute.xlu0 0
    %23 = vperm.xlu0 %22, %v17
    %v24 = vpop.permute.xlu0 %23
    %v26 = vmul.f32 %v19, %v24
    %v27 = vmul.f32 %v20, %v24
    %29 = vset.pattern.permute.xlu0 0
    %30 = vperm.xlu0 %29, %v18
    %v31 = vpop.permute.xlu0 %30
    %v33 = vadd.f32 %v26, %v31
    %v34 = vadd.f32 %v27, %v31
    %35 = vst [vmem:[#allocation2] sm:$0xff] %v33
    %36 = vst [vmem:[#allocation2 + $0x8] sm:$0xff] %v34
    // Predicated region
    $region14: #{tpu_custom_call.1} parent=1 // pred_check
      _
    $region15: #{tpu_custom_call.1} parent=1 // pred_check_branch
      %38 = sbr.rel (0) target = $region17
    $region16: #{tpu_custom_call.1} parent=1 // pred_region
      %s40 = ssub.s32 256, 256
      %41 = vsyncadd [#allocation3], %s40
      %s43 = sshll.u32 [#allocation2], 4
      %s44 = int_to_ptr.vmem [resolvable:$true] %s43
      %46 = dma.vmem_to_hbm [thread:$0]  %s44, 256, %s3, [#allocation3]
    $region17: #{tpu_custom_call.1} parent=1 // pred_fallthru
      _
    // Predicated region
    $region18: #{tpu_custom_call.1} parent=1 // pred_check
      _
    $region19: #{tpu_custom_call.1} parent=1 // pred_check_branch
      %48 = sbr.rel (0) target = $region21
    $region20: #{tpu_custom_call.1} parent=1 // pred_region
      %49 = dma.done [#allocation3], 256
    $region21: #{tpu_custom_call.1} parent=1 // pred_fallthru
      _
    %50 = vsyncpa [#allocation3], 1

</llo_original>
